<compile_context>
chip_gen: v7x
topology: tpu7x:2x2x1
jax: 0.10.0
libtpu: 0.0.40
codegen_flags: <defaults>
</compile_context>

<pallas_src>
import functools

import jax
import jax.numpy as jnp
from jax.experimental import pallas as pl
from jax.experimental.pallas import tpu as pltpu

LANE = 128
BLOCK_R_MAX = 2048  # 2048x128xf32 = 1 MiB block; 2 inputs double-buffered = 4 MiB.


def _sublane_multiple(dtype) -> int:
    # (8,128) tiling for 32-bit, (16,128) for 16-bit, (32,128) for 8-bit dtypes.
    return {4: 8, 2: 16, 1: 32}.get(jnp.dtype(dtype).itemsize, 8)


def _mixed_loss_kernel(x_ref, t_ref, acc_ref, *, valid_rows):
    """Accumulates block partials into acc_ref (1, 4, 8, 128):
       [0]=sum(x*t)  [1]=sum(x)  [2]=sum(t)  [3]=sum(bce_elementwise)."""
    c = pl.program_id(0)   # core split ("parallel")
    j = pl.program_id(1)   # block index within the split ("arbitrary")

    @pl.when(j == 0)
    def _init():
        acc_ref[...] = jnp.zeros_like(acc_ref)

    block_r = x_ref.shape[0]
    # Unclamped global block index (index_map clamps OOB reads; we zero them
    # here so overflow / tail rows contribute exactly nothing).
    g = c * pl.num_programs(1) + j
    row_ids = jax.lax.broadcasted_iota(jnp.int32, (block_r, 1), 0) + g * block_r
    valid = row_ids < valid_rows                                  # (block_r, 1)

    x = jnp.where(valid, x_ref[...].astype(jnp.float32), 0.0)
    t = jnp.where(valid, t_ref[...].astype(jnp.float32), 0.0)

    # BCE elementwise, matching torch.nn.BCELoss (logs clamped at -100).
    # With x = t = 0 (masked / zero-padded elements) every term is exactly 0.
    log_x = jnp.maximum(jnp.log(x), -100.0)
    log_1mx = jnp.maximum(jnp.log(1.0 - x), -100.0)
    bce = -(t * log_x + (1.0 - t) * log_1mx)

    # Reduce (block_r, 128) -> (8, 128): plain vreg adds (VPU), no XLU trees,
    # no per-step scalar round trip.
    k = block_r // 8
    x3 = x.reshape(k, 8, LANE)
    t3 = t.reshape(k, 8, LANE)
    acc_ref[0, 0] += jnp.sum(x3 * t3, axis=0)      # dice intersection
    acc_ref[0, 1] += jnp.sum(x3, axis=0)           # sum(input)
    acc_ref[0, 2] += jnp.sum(t3, axis=0)           # sum(target)
    acc_ref[0, 3] += jnp.sum(bce.reshape(k, 8, LANE), axis=0)


def mixed_loss(x, t):
    """JAX/Pallas equivalent of MixedLoss.forward(input, target)."""
    n = x.size
    xf = x.reshape(-1)
    tf = t.reshape(-1)

    sub = max(_sublane_multiple(x.dtype), _sublane_multiple(t.dtype))
    tile = sub * LANE
    pad = (-n) % tile
    if pad:  # only when n is not tile-aligned (not the case for typical NCHW)
        xf = jnp.pad(xf, (0, pad))
        tf = jnp.pad(tf, (0, pad))

    rows = xf.shape[0] // LANE
    x2 = xf.reshape(rows, LANE)
    t2 = tf.reshape(rows, LANE)

    block_r = min(BLOCK_R_MAX, rows)          # multiple of 8/16/32 and <= rows
    nblocks = pl.cdiv(rows, block_r)
    n_par = 2 if nblocks >= 2 else 1          # v7x: feed both TensorCores
    bpp = pl.cdiv(nblocks, n_par)

    def in_map(c, j):
        # Clamp: an overflow step of the second core re-reads the last block;
        # its contribution is masked to zero inside the kernel.
        return (jnp.minimum(c * bpp + j, nblocks - 1), 0)

    kernel = functools.partial(_mixed_loss_kernel, valid_rows=rows)

    partials = pl.pallas_call(
        kernel,
        out_shape=jax.ShapeDtypeStruct((n_par, 4, 8, LANE), jnp.float32),
        grid_spec=pltpu.PrefetchScalarGridSpec(
            num_scalar_prefetch=0,
            grid=(n_par, bpp),
            in_specs=[
                pl.BlockSpec((block_r, LANE), in_map),
                pl.BlockSpec((block_r, LANE), in_map),
            ],
            out_specs=pl.BlockSpec((1, 4, 8, LANE), lambda c, j: (c, 0, 0, 0)),
        ),
        compiler_params=pltpu.CompilerParams(
            dimension_semantics=("parallel", "arbitrary")),
    )(x2, t2)

    sums = jnp.sum(partials, axis=(0, 2, 3))         # tiny (4 KiB) final reduce
    intersection, sum_x, sum_t, bce_sum = sums[0], sums[1], sums[2], sums[3]

    smooth = 1.0
    dice_c = (2.0 * intersection + smooth) / (sum_x + sum_t + smooth)
    dice = 3.0 * (1.0 - dice_c)
    bce = bce_sum / n
    # Note: the PyTorch module also computes weightBinaryloss and focalLoss,
    # but they do NOT contribute to the returned value (loss = bce + dice),
    # so they are omitted from the hot path.
    return bce + dice


def _reference(x, t):
    x = x.reshape(-1).astype(jnp.float32)
    t = t.reshape(-1).astype(jnp.float32)
    smooth = 1.0
    inter = jnp.sum(x * t)
    dice_c = (2.0 * inter + smooth) / (jnp.sum(x) + jnp.sum(t) + smooth)
    dice = 3.0 * (1.0 - dice_c)
    bce = jnp.mean(-(t * jnp.maximum(jnp.log(x), -100.0)
                     + (1.0 - t) * jnp.maximum(jnp.log(1.0 - x), -100.0)))
    return bce + dice


if __name__ == "__main__":
    key = jax.random.PRNGKey(0)
    k1, k2 = jax.random.split(key)
    # input: probabilities in (0, 1); target: binary mask. NCHW layout.
    x = jax.random.uniform(k1, (2, 4, 16, 16), dtype=jnp.float32,
                           minval=0.01, maxval=0.99)
    t = (jax.random.uniform(k2, (2, 4, 16, 16)) > 0.5).astype(jnp.float32)

    loss = mixed_loss(x, t)
    jax.block_until_ready(loss)

    ref = _reference(x, t)
    assert jnp.allclose(loss, ref, rtol=1e-5, atol=1e-5), (loss, ref)
    print("KERNEL_OK")
</pallas_src>

<mosaic_0001>
module attributes {stable_mosaic.version = 11 : i64} {
  func.func @_mixed_loss_kernel(%arg0: i32, %arg1: i32, %arg2: memref<16x128xf32, #tpu.memory_space<vmem>>, %arg3: memref<16x128xf32, #tpu.memory_space<vmem>>, %arg4: memref<1x4x8x128xf32, #tpu.memory_space<vmem>>) attributes {dimension_semantics = [#tpu.dimension_semantics<parallel>, #tpu.dimension_semantics<arbitrary>], iteration_bounds = array<i64: 1, 1>, scalar_prefetch = 0 : i64, scratch_operands = 0 : i64, tpu.core_type = #tpu.core_type<tc>, window_params = [{transform_indices = @transform_0, window_bounds = array<i64: 16, 128>}, {transform_indices = @transform_1, window_bounds = array<i64: 16, 128>}, {transform_indices = @transform_2, window_bounds = array<i64: 1, 4, 8, 128>}]} {
    %c0_i32 = arith.constant 0 : i32
    %0 = arith.cmpi eq, %arg1, %c0_i32 : i32
    %1 = arith.extui %0 : i1 to i32
    %c0_i32_0 = arith.constant 0 : i32
    %2 = arith.cmpi ne, %1, %c0_i32_0 : i32
    scf.if %2 {
      %cst_44 = arith.constant 0.000000e+00 : f32
      %68 = vector.broadcast %cst_44 : f32 to vector<1x4x8x128xf32>
      %c0_45 = arith.constant 0 : index
      %c0_46 = arith.constant 0 : index
      %c0_47 = arith.constant 0 : index
      %c0_48 = arith.constant 0 : index
      %69 = vector.load %arg4[%c0_45, %c0_46, %c0_47, %c0_48] : memref<1x4x8x128xf32, #tpu.memory_space<vmem>>, vector<1x4x8x128xf32>
      tpu.vector_store %arg4[%c0_45, %c0_46, %c0_47, %c0_48], %68 {strides = array<i32>} : memref<1x4x8x128xf32, #tpu.memory_space<vmem>>, vector<1x4x8x128xf32>,
    } else {
    }
    %c1_i32 = arith.constant 1 : i32
    %3 = arith.muli %arg0, %c1_i32 : i32
    %4 = arith.addi %3, %arg1 : i32
    %5 = tpu.iota {dimensions = array<i32: 0>} : vector<16x1xi32>
    %c16_i32 = arith.constant 16 : i32
    %6 = arith.muli %4, %c16_i32 : i32
    %7 = vector.broadcast %6 : i32 to vector<16x1xi32>
    %8 = arith.addi %5, %7 : vector<16x1xi32>
    %c16_i32_1 = arith.constant 16 : i32
    %9 = vector.broadcast %c16_i32_1 : i32 to vector<16x1xi32>
    %10 = arith.cmpi slt, %8, %9 : vector<16x1xi32>
    %c0 = arith.constant 0 : index
    %c0_2 = arith.constant 0 : index
    %11 = vector.load %arg2[%c0, %c0_2] : memref<16x128xf32, #tpu.memory_space<vmem>>, vector<16x128xf32>
    %cst = arith.constant 0.000000e+00 : f32
    %12 = vector.shape_cast %10 : vector<16x1xi1> to vector<16x1xi1>
    %13 = vector.broadcast %12 : vector<16x1xi1> to vector<16x128xi1>
    %14 = vector.broadcast %cst : f32 to vector<16x128xf32>
    %15 = arith.select %13, %11, %14 : vector<16x128xi1>, vector<16x128xf32>
    %c0_3 = arith.constant 0 : index
    %c0_4 = arith.constant 0 : index
    %16 = vector.load %arg3[%c0_3, %c0_4] : memref<16x128xf32, #tpu.memory_space<vmem>>, vector<16x128xf32>
    %cst_5 = arith.constant 0.000000e+00 : f32
    %17 = vector.shape_cast %10 : vector<16x1xi1> to vector<16x1xi1>
    %18 = vector.broadcast %17 : vector<16x1xi1> to vector<16x128xi1>
    %19 = vector.broadcast %cst_5 : f32 to vector<16x128xf32>
    %20 = arith.select %18, %16, %19 : vector<16x128xi1>, vector<16x128xf32>
    %21 = math.log %15 : vector<16x128xf32>
    %cst_6 = arith.constant -1.000000e+02 : f32
    %22 = vector.broadcast %cst_6 : f32 to vector<16x128xf32>
    %23 = arith.maximumf %21, %22 : vector<16x128xf32>
    %cst_7 = arith.constant 1.000000e+00 : f32
    %24 = vector.broadcast %cst_7 : f32 to vector<16x128xf32>
    %25 = arith.subf %24, %15 : vector<16x128xf32>
    %26 = math.log %25 : vector<16x128xf32>
    %cst_8 = arith.constant -1.000000e+02 : f32
    %27 = vector.broadcast %cst_8 : f32 to vector<16x128xf32>
    %28 = arith.maximumf %26, %27 : vector<16x128xf32>
    %29 = arith.mulf %20, %23 : vector<16x128xf32>
    %cst_9 = arith.constant 1.000000e+00 : f32
    %30 = vector.broadcast %cst_9 : f32 to vector<16x128xf32>
    %31 = arith.subf %30, %20 : vector<16x128xf32>
    %32 = arith.mulf %31, %28 : vector<16x128xf32>
    %33 = arith.addf %29, %32 : vector<16x128xf32>
    %cst_10 = arith.constant 0.000000e+00 : f32
    %34 = vector.broadcast %cst_10 : f32 to vector<16x128xf32>
    %35 = arith.subf %34, %33 : vector<16x128xf32>
    %36 = vector.shape_cast %15 : vector<16x128xf32> to vector<2x8x128xf32>
    %37 = vector.shape_cast %20 : vector<16x128xf32> to vector<2x8x128xf32>
    %c0_11 = arith.constant 0 : index
    %c0_12 = arith.constant 0 : index
    %c0_13 = arith.constant 0 : index
    %c0_14 = arith.constant 0 : index
    %38 = vector.load %arg4[%c0_11, %c0_12, %c0_13, %c0_14] : memref<1x4x8x128xf32, #tpu.memory_space<vmem>>, vector<1x1x8x128xf32>
    %39 = vector.shape_cast %38 : vector<1x1x8x128xf32> to vector<8x128xf32>
    %40 = arith.mulf %36, %37 : vector<2x8x128xf32>
    %cst_15 = arith.constant dense<0.000000e+00> : vector<8x128xf32>
    %41 = vector.multi_reduction <add>, %40, %cst_15 [0] : vector<2x8x128xf32> to vector<8x128xf32>
    %42 = arith.addf %39, %41 : vector<8x128xf32>
    %c0_16 = arith.constant 0 : index
    %c0_17 = arith.constant 0 : index
    %c0_18 = arith.constant 0 : index
    %c0_19 = arith.constant 0 : index
    %43 = vector.load %arg4[%c0_16, %c0_17, %c0_18, %c0_19] : memref<1x4x8x128xf32, #tpu.memory_space<vmem>>, vector<1x1x8x128xf32>
    %44 = vector.shape_cast %43 : vector<1x1x8x128xf32> to vector<8x128xf32>
    %45 = vector.shape_cast %42 : vector<8x128xf32> to vector<1x1x8x128xf32>
    tpu.vector_store %arg4[%c0_16, %c0_17, %c0_18, %c0_19], %45 {strides = array<i32>} : memref<1x4x8x128xf32, #tpu.memory_space<vmem>>, vector<1x1x8x128xf32>,
    %c0_20 = arith.constant 0 : index
    %c1 = arith.constant 1 : index
    %c0_21 = arith.constant 0 : index
    %c0_22 = arith.constant 0 : index
    %46 = vector.load %arg4[%c0_20, %c1, %c0_21, %c0_22] : memref<1x4x8x128xf32, #tpu.memory_space<vmem>>, vector<1x1x8x128xf32>
    %47 = vector.shape_cast %46 : vector<1x1x8x128xf32> to vector<8x128xf32>
    %cst_23 = arith.constant dense<0.000000e+00> : vector<8x128xf32>
    %48 = vector.multi_reduction <add>, %36, %cst_23 [0] : vector<2x8x128xf32> to vector<8x128xf32>
    %49 = arith.addf %47, %48 : vector<8x128xf32>
    %c0_24 = arith.constant 0 : index
    %c1_25 = arith.constant 1 : index
    %c0_26 = arith.constant 0 : index
    %c0_27 = arith.constant 0 : index
    %50 = vector.load %arg4[%c0_24, %c1_25, %c0_26, %c0_27] : memref<1x4x8x128xf32, #tpu.memory_space<vmem>>, vector<1x1x8x128xf32>
    %51 = vector.shape_cast %50 : vector<1x1x8x128xf32> to vector<8x128xf32>
    %52 = vector.shape_cast %49 : vector<8x128xf32> to vector<1x1x8x128xf32>
    tpu.vector_store %arg4[%c0_24, %c1_25, %c0_26, %c0_27], %52 {strides = array<i32>} : memref<1x4x8x128xf32, #tpu.memory_space<vmem>>, vector<1x1x8x128xf32>,
    %c0_28 = arith.constant 0 : index
    %c2 = arith.constant 2 : index
    %c0_29 = arith.constant 0 : index
    %c0_30 = arith.constant 0 : index
    %53 = vector.load %arg4[%c0_28, %c2, %c0_29, %c0_30] : memref<1x4x8x128xf32, #tpu.memory_space<vmem>>, vector<1x1x8x128xf32>
    %54 = vector.shape_cast %53 : vector<1x1x8x128xf32> to vector<8x128xf32>
    %cst_31 = arith.constant dense<0.000000e+00> : vector<8x128xf32>
    %55 = vector.multi_reduction <add>, %37, %cst_31 [0] : vector<2x8x128xf32> to vector<8x128xf32>
    %56 = arith.addf %54, %55 : vector<8x128xf32>
    %c0_32 = arith.constant 0 : index
    %c2_33 = arith.constant 2 : index
    %c0_34 = arith.constant 0 : index
    %c0_35 = arith.constant 0 : index
    %57 = vector.load %arg4[%c0_32, %c2_33, %c0_34, %c0_35] : memref<1x4x8x128xf32, #tpu.memory_space<vmem>>, vector<1x1x8x128xf32>
    %58 = vector.shape_cast %57 : vector<1x1x8x128xf32> to vector<8x128xf32>
    %59 = vector.shape_cast %56 : vector<8x128xf32> to vector<1x1x8x128xf32>
    tpu.vector_store %arg4[%c0_32, %c2_33, %c0_34, %c0_35], %59 {strides = array<i32>} : memref<1x4x8x128xf32, #tpu.memory_space<vmem>>, vector<1x1x8x128xf32>,
    %c0_36 = arith.constant 0 : index
    %c3 = arith.constant 3 : index
    %c0_37 = arith.constant 0 : index
    %c0_38 = arith.constant 0 : index
    %60 = vector.load %arg4[%c0_36, %c3, %c0_37, %c0_38] : memref<1x4x8x128xf32, #tpu.memory_space<vmem>>, vector<1x1x8x128xf32>
    %61 = vector.shape_cast %60 : vector<1x1x8x128xf32> to vector<8x128xf32>
    %62 = vector.shape_cast %35 : vector<16x128xf32> to vector<2x8x128xf32>
    %cst_39 = arith.constant dense<0.000000e+00> : vector<8x128xf32>
    %63 = vector.multi_reduction <add>, %62, %cst_39 [0] : vector<2x8x128xf32> to vector<8x128xf32>
    %64 = arith.addf %61, %63 : vector<8x128xf32>
    %c0_40 = arith.constant 0 : index
    %c3_41 = arith.constant 3 : index
    %c0_42 = arith.constant 0 : index
    %c0_43 = arith.constant 0 : index
    %65 = vector.load %arg4[%c0_40, %c3_41, %c0_42, %c0_43] : memref<1x4x8x128xf32, #tpu.memory_space<vmem>>, vector<1x1x8x128xf32>
    %66 = vector.shape_cast %65 : vector<1x1x8x128xf32> to vector<8x128xf32>
    %67 = vector.shape_cast %64 : vector<8x128xf32> to vector<1x1x8x128xf32>
    tpu.vector_store %arg4[%c0_40, %c3_41, %c0_42, %c0_43], %67 {strides = array<i32>} : memref<1x4x8x128xf32, #tpu.memory_space<vmem>>, vector<1x1x8x128xf32>,
    return
  }
  func.func @transform_0(%arg0: i32, %arg1: i32) -> (i32, i32) {
    %c1_i32 = arith.constant 1 : i32
    %0 = arith.muli %arg0, %c1_i32 : i32
    %1 = arith.addi %0, %arg1 : i32
    %c0_i32 = arith.constant 0 : i32
    %2 = arith.minsi %1, %c0_i32 : i32
    %c0_i32_0 = arith.constant 0 : i32
    %c0_i32_1 = arith.constant 0 : i32
    return %2, %c0_i32_0 : i32, i32
  }
  func.func @transform_1(%arg0: i32, %arg1: i32) -> (i32, i32) {
    %c1_i32 = arith.constant 1 : i32
    %0 = arith.muli %arg0, %c1_i32 : i32
    %1 = arith.addi %0, %arg1 : i32
    %c0_i32 = arith.constant 0 : i32
    %2 = arith.minsi %1, %c0_i32 : i32
    %c0_i32_0 = arith.constant 0 : i32
    %c0_i32_1 = arith.constant 0 : i32
    return %2, %c0_i32_0 : i32, i32
  }
  func.func @transform_2(%arg0: i32, %arg1: i32) -> (i32, i32, i32, i32) {
    %c0_i32 = arith.constant 0 : i32
    %c0_i32_0 = arith.constant 0 : i32
    %c0_i32_1 = arith.constant 0 : i32
    %c0_i32_2 = arith.constant 0 : i32
    return %arg0, %c0_i32, %c0_i32_0, %c0_i32_1 : i32, i32, i32, i32
  }
}

</mosaic_0001>

<llo_original>
// kernel: tpu_custom_call.1
$region0: #{tpu_custom_call.1}
  #allocation0 [shape = 'u32[]', space=smem, size = 0x4, offset = 0x4, fixed_abs, tag = 'smem constant byte address 0x4 - core index']
  #allocation1 [shape = 'u32[144,128]{1,0:T(1,128)}', space=vmem, size = 0x12000, scoped, tag = 'internal scratch']
  %s0 = inlined_call_operand.hbm [shape: f32[16,128], index: 0, kind: input, shape index: {}]
  %s1 = inlined_call_operand.hbm [shape: f32[16,128], index: 1, kind: input, shape index: {}]
  %s2 = inlined_call_operand.hbm [shape: f32[1,4,8,128], index: 2, kind: output, shape index: {}]
  %s3 = sld [smem:[#allocation0]]
  $region30: #{tpu_custom_call.1} parent=0
    _
  %s5 = ssub.s32 1, %s3
  %s6 = scalar_select 0, %s5, %s3
  $region1: #{tpu_custom_call.1} parent=0
    #allocation2 [shape = 'u8[8192]{0}', space=vmem, size = 0x2000, scoped, tag = 'input window, operand 0, single buffered']
    #allocation3 [shape = 's32[1]{0}', space=sflag, size = 0x4, scoped, tag = 'scoped memory for tpu_custom_call.1']
    #allocation4 [shape = 's32[1]{0}', space=sflag, size = 0x4, scoped, tag = 'scoped memory for tpu_custom_call.1']
    #allocation5 [shape = 'u8[8192]{0}', space=vmem, size = 0x2000, scoped, tag = 'input window, operand 1, single buffered']
    #allocation6 [shape = 's32[1]{0}', space=sflag, size = 0x4, scoped, tag = 'scoped memory for tpu_custom_call.1']
    #allocation7 [shape = 'u8[16384]{0}', space=vmem, size = 0x4000, scoped, tag = 'output window, operand 0, single buffered']
    %7 = vsyncpa [#allocation3], 0
    %8 = vsyncpa [#allocation6], 0
    %9 = vsyncpa [#allocation4], 0
    // Predicated region
    $region2: #{tpu_custom_call.1} parent=1 // pred_check
      _
    $region3: #{tpu_custom_call.1} parent=1 // pred_check_branch
      %11 = sbr.rel (0) target = $region5
    $region4: #{tpu_custom_call.1} parent=1 // pred_region
      %s12 = sadd.s32 0, 0
      %p13 = scmp.lt.s32.totalorder %s12, 0
      %s14 = scalar_select %p13, %s12, 0
      %s15 = smul.u32 2, %s14
      %s17 = ssub.s32 256, 256
      %18 = vsyncadd [#allocation3], %s17
      %s19 = smul.addr %s15, 128
      %s20 = scalar_lea.hbm %s0, %s19
      %s21 = sshll.u32 [#allocation2], 4
      %s22 = int_to_ptr.vmem [resolvable:$true] %s21
      %27 = dma.hbm_to_vmem [thread:$0]  %s20, 256, %s22, [#allocation3], 128, 128, 8
    $region5: #{tpu_custom_call.1} parent=1 // pred_fallthru
      _
    // Predicated region
    $region6: #{tpu_custom_call.1} parent=1 // pred_check
      _
    $region7: #{tpu_custom_call.1} parent=1 // pred_check_branch
      %29 = sbr.rel (0) target = $region9
    $region8: #{tpu_custom_call.1} parent=1 // pred_region
      %s30 = sadd.s32 0, 0
      %p31 = scmp.lt.s32.totalorder %s30, 0
      %s32 = scalar_select %p31, %s30, 0
      %s33 = smul.u32 2, %s32
      %s35 = ssub.s32 256, 256
      %36 = vsyncadd [#allocation6], %s35
      %s37 = smul.addr %s33, 128
      %s38 = scalar_lea.hbm %s1, %s37
      %s39 = sshll.u32 [#allocation5], 4
      %s40 = int_to_ptr.vmem [resolvable:$true] %s39
      %45 = dma.hbm_to_vmem [thread:$0]  %s38, 256, %s40, [#allocation6], 128, 128, 8
    $region9: #{tpu_custom_call.1} parent=1 // pred_fallthru
      _
    // Predicated region
    $region10: #{tpu_custom_call.1} parent=1 // pred_check
      _
    $region11: #{tpu_custom_call.1} parent=1 // pred_check_branch
      %47 = sbr.rel (0) target = $region13
    $region12: #{tpu_custom_call.1} parent=1 // pred_region
      %48 = dma.done [#allocation3], 256
    $region13: #{tpu_custom_call.1} parent=1 // pred_fallthru
      _
    // Predicated region
    $region14: #{tpu_custom_call.1} parent=1 // pred_check
      _
    $region15: #{tpu_custom_call.1} parent=1 // pred_check_branch
      %50 = sbr.rel (0) target = $region17
    $region16: #{tpu_custom_call.1} parent=1 // pred_region
      %51 = dma.done [#allocation6], 256
    $region17: #{tpu_custom_call.1} parent=1 // pred_fallthru
      _
    %s52 = sadd.s32 0, 0
    %p53 = scmp.lt.s32.totalorder %s52, 0
    %s54 = scalar_select %p53, %s52, 0
    %s55 = smul.u32 2, %s54
    %s56 = sadd.s32 0, 0
    %p57 = scmp.lt.s32.totalorder %s56, 0
    %s58 = scalar_select %p57, %s56, 0
    %s59 = smul.u32 2, %s58
    %p60 = scmp.eq.s32.totalorder 0, 0
    // Predicated region
    $region18: #{tpu_custom_call.1} parent=1 // pred_check
      %p61 = pneg %p60
    $region19: #{tpu_custom_call.1} parent=1 // pred_check_branch
      %63 = sbr.rel (%p61) target = $region21
    $region20: #{tpu_custom_call.1} parent=1 // pred_region
      %64 = vst [vmem:[#allocation7] sm:$0xff] 0.0
      %65 = vst [vmem:[#allocation7 + $0x8] sm:$0xff] 0.0
      %66 = vst [vmem:[#allocation7 + $0x10] sm:$0xff] 0.0
      %67 = vst [vmem:[#allocation7 + $0x18] sm:$0xff] 0.0
    $region21: #{tpu_custom_call.1} parent=1 // pred_fallthru
      _
    %s68 = sadd.s32 0, 0
    %v69 = vlaneseq
    %v70 = vshrl.u32 %v69, 7
    %v71 = vadd.s32 %v70, 8
    %s72 = smul.u32 %s68, 16
    %v73 = vstv %s72
    %v74 = vadd.s32 %v70, %v73
    %v75 = vadd.s32 %v71, %v73
    %vm76 = vcmp.lt.s32.totalorder %v74, 16
    %vm77 = vcmp.lt.s32.totalorder %v75, 16
    %v78 = vld [vmem:[#allocation2] sm:$0xff]
    %v79 = vld [vmem:[#allocation2 + $0x8] sm:$0xff]
    %v80 = vsel %vm76, 1, 0
    %v81 = vsel %vm77, 1, 0
    %vm82 = vcmp.eq.s32.totalorder %v80, 1
    %vm83 = vcmp.eq.s32.totalorder %v81, 1
    %v84 = vsel %vm82, %v78, 0.0
    %v85 = vsel %vm83, %v79, 0.0
    %v86 = vld [vmem:[#allocation5] sm:$0xff]
    %v87 = vld [vmem:[#allocation5 + $0x8] sm:$0xff]
    %v88 = vsel %vm82, %v86, 0.0
    %v89 = vsel %vm83, %v87, 0.0
    %v90 = vlog2.pop %v84
    %v91 = vmul.f32 %v90, 0.6931472
    %v92 = vlog2.pop %v85
    %v93 = vmul.f32 %v92, 0.6931472
    %v94 = vmax.f32 %v91, -100.0
    %v95 = vmax.f32 %v93, -100.0
    %v96 = vsub.f32 1.0, %v84
    %v97 = vsub.f32 1.0, %v85
    %v98 = vlog2.pop %v96
    %v99 = vmul.f32 %v98, 0.6931472
    %v100 = vlog2.pop %v97
    %v101 = vmul.f32 %v100, 0.6931472
    %v102 = vmax.f32 %v99, -100.0
    %v103 = vmax.f32 %v101, -100.0
    %v104 = vmul.f32 %v88, %v94
    %v105 = vmul.f32 %v89, %v95
    %v106 = vsub.f32 1.0, %v88
    %v107 = vsub.f32 1.0, %v89
    %v108 = vmul.f32 %v106, %v102
    %v109 = vmul.f32 %v107, %v103
    %v110 = vadd.f32 %v104, %v108
    %v111 = vadd.f32 %v105, %v109
    %v112 = vsub.f32 0.0, %v110
    %v113 = vsub.f32 0.0, %v111
    %v114 = vld [vmem:[#allocation7] sm:$0xff]
    %v115 = vmul.f32 %v84, %v88
    %v116 = vmul.f32 %v85, %v89
    %v117 = vadd.f32 %v115, %v116
    %v118 = vadd.f32 %v114, %v117
    %119 = vst [vmem:[#allocation7] sm:$0xff] %v118
    %s120 = scalar_lea.vmem [#allocation7], 8
    %v121 = vld [vmem:[%s120] sm:$0xff]
    %v122 = vadd.f32 %v84, %v85
    %v123 = vadd.f32 %v121, %v122
    %124 = vst [vmem:[%s120] sm:$0xff] %v123
    %s125 = scalar_lea.vmem [#allocation7], 16
    %v126 = vld [vmem:[%s125] sm:$0xff]
    %v127 = vadd.f32 %v88, %v89
    %v128 = vadd.f32 %v126, %v127
    %129 = vst [vmem:[%s125] sm:$0xff] %v128
    %s130 = scalar_lea.vmem [#allocation7], 24
    %v131 = vld [vmem:[%s130] sm:$0xff]
    %v132 = vadd.f32 %v112, %v113
    %v133 = vadd.f32 %v131, %v132
    %134 = vst [vmem:[%s130] sm:$0xff] %v133
    // Predicated region
    $region22: #{tpu_custom_call.1} parent=1 // pred_check
      _
    $region23: #{tpu_custom_call.1} parent=1 // pred_check_branch
      %136 = sbr.rel (0) target = $region25
    $region24: #{tpu_custom_call.1} parent=1 // pred_region
      %s138 = ssub.s32 512, 512
      %139 = vsyncadd [#allocation4], %s138
      %s140 = sshll.u32 [#allocation7], 4
      %s141 = int_to_ptr.vmem [resolvable:$true] %s140
      %146 = dma.vmem_to_hbm [thread:$0]  %s141, 512, %s2, [#allocation4], 128, 128, 8
    $region25: #{tpu_custom_call.1} parent=1 // pred_fallthru
      _
    // Predicated region
    $region26: #{tpu_custom_call.1} parent=1 // pred_check
      _
    $region27: #{tpu_custom_call.1} parent=1 // pred_check_branch
      %148 = sbr.rel (0) target = $region29
    $region28: #{tpu_custom_call.1} parent=1 // pred_region
      %149 = dma.done [#allocation4], 512
    $region29: #{tpu_custom_call.1} parent=1 // pred_fallthru
      _
    %150 = vsyncpa [#allocation3], 1
    %151 = vsyncpa [#allocation6], 1
    %152 = vsyncpa [#allocation4], 1

</llo_original>
